<compile_context>
chip_gen: v7x
topology: tpu7x:2x2x1
jax: 0.10.0
libtpu: 0.0.40
codegen_flags: <defaults>
</compile_context>

<pallas_src>
import functools
import math

import jax
import jax.numpy as jnp
from jax import lax
from jax.experimental import pallas as pl
from jax.experimental.pallas import tpu as pltpu

LANES = 128
SUBLANES = 8


def _round_up(x: int, m: int) -> int:
    return (x + m - 1) // m * m


def make_positional_encoding(hidden_size: int, max_len: int) -> jnp.ndarray:
    """Same buffer as PositionalEncoding.__init__ (plain JAX; parameter setup)."""
    position = jnp.arange(max_len, dtype=jnp.float32)[:, None]
    div_term = jnp.exp(
        jnp.arange(0, hidden_size, 2, dtype=jnp.float32)
        * (-math.log(10000.0) / hidden_size)
    )
    pe = jnp.zeros((max_len, hidden_size), jnp.float32)
    pe = pe.at[:, 0::2].set(jnp.sin(position * div_term))
    pe = pe.at[:, 1::2].set(jnp.cos(position * div_term))
    return pe


def prepare_embedding_params(emb_table: jnp.ndarray, pe: jnp.ndarray):
    """One-time (init) lane/sublane padding of the parameters.

    Hoisted out of the per-call path: when hidden % 128 != 0 this is an
    O(vocab*hidden) copy that must not be paid on every forward.
    """
    vocab, hidden = emb_table.shape
    hidden_p = _round_up(hidden, LANES)
    vocab_p = _round_up(vocab, SUBLANES)
    emb_p = jnp.pad(emb_table, ((0, vocab_p - vocab), (0, hidden_p - hidden)))
    max_len = pe.shape[0]
    pe_p = jnp.pad(pe, ((0, _round_up(max_len, SUBLANES) - max_len),
                        (0, hidden_p - hidden)))
    return emb_p, pe_p


def _vmem_capacity_bytes() -> int:
    try:
        return int(pltpu.get_tpu_info().vmem_capacity_bytes)
    except Exception:
        return 64 << 20  # v7x-conservative fallback


def _choose_seq_tile(seq_len: int, hidden_p: int, vmem_cap: int) -> int:
    """Generation-aware token-tile size (rows are a multiple of 8 sublanes)."""
    seq8 = _round_up(max(seq_len, 1), SUBLANES)
    if vmem_cap >= (100 << 20):        # v5e / v6e: 128 MiB physical VMEM
        byte_cap, row_cap = 8 << 20, 1024
    else:                              # v7x: 64 MiB per TensorCore
        byte_cap, row_cap = 4 << 20, 512
    rows_by_bytes = max(SUBLANES,
                        byte_cap // (hidden_p * 4) // SUBLANES * SUBLANES)
    cap = min(row_cap, rows_by_bytes)
    if seq8 <= cap:
        return seq8                    # single tile, no seq padding beyond x8
    return cap


# ---------------------------------------------------------------------------
# Fast path: embedding table resident in VMEM, one-hot gather on the MXU.
# ---------------------------------------------------------------------------
def _onehot_gather_kernel(ids_ref, emb_ref, pe_ref, out_ref, *, scale):
    # ids_ref : VMEM (seq_tile, 1) int32
    # emb_ref : VMEM (vocab_p, hidden_p) f32, resident for the whole grid
    # pe_ref  : VMEM (seq_tile, hidden_p) f32, resident across the batch axis
    # out_ref : VMEM (seq_tile, hidden_p) f32
    ids = ids_ref[...]
    seq_tile = ids.shape[0]
    vocab_p = emb_ref.shape[0]
    onehot = (ids == lax.broadcasted_iota(jnp.int32, (seq_tile, vocab_p), 1)
              ).astype(emb_ref.dtype)
    rows = jnp.dot(onehot, emb_ref[...], preferred_element_type=jnp.float32)
    out_ref[...] = rows * scale + pe_ref[...]


# ---------------------------------------------------------------------------
# Large-table path: table in HBM, pipelined per-row DMA gather.
# ---------------------------------------------------------------------------
def _hbm_gather_kernel(ids_ref, emb_hbm, pe_ref, out_ref, stage_ref, sem_ref, *,
                       seq_tile, batch, vocab_size, scale, unroll):
    # ids_ref  : SMEM (batch, seq_padded) int32 (scalar-prefetched)
    # emb_hbm  : HBM  (vocab_p, hidden_p) f32   (raw ref, manual DMA gather)
    # pe_ref   : VMEM (seq_tile, hidden_p) f32  (resident across batch axis)
    # out_ref  : VMEM (seq_tile, hidden_p) f32
    # stage_ref: VMEM (2, seq_tile, hidden_p) f32 (double-buffered gather)
    # sem_ref  : DMA semaphores, shape (2,) -- one per staging slot
    s = pl.program_id(0)       # seq tile (outer, "parallel")
    b = pl.program_id(1)       # batch    (inner, "arbitrary": pipelined)
    base = s * seq_tile

    def issue_gather(tgt_b, slot):
        def issue(t, carry):
            # clip keeps the DMA address in-bounds; PyTorch nn.Embedding would
            # raise on out-of-range ids (padded positions carry id 0).
            tok = jnp.clip(ids_ref[tgt_b, base + t], 0, vocab_size - 1)
            pltpu.make_async_copy(
                emb_hbm.at[pl.ds(tok, 1), :],
                stage_ref.at[slot, pl.ds(t, 1), :],
                sem_ref.at[slot],
            ).start()
            return carry
        lax.fori_loop(0, seq_tile, issue, 0, unroll=unroll)

    # Prime: the first batch step of every seq-tile row gathers its own rows
    # (keeps each "parallel" seq row self-contained -> megacore safe).
    @pl.when(b == 0)
    def _():
        issue_gather(0, 0)

    # Prefetch the next batch step's rows into the other slot; these DMAs
    # overlap this step's wait + compute + output writeback.
    @pl.when(b + 1 < batch)
    def _():
        issue_gather(b + 1, (b + 1) % 2)

    # Wait for this step's rows (single semaphore per slot; row-sized
    # descriptors simply decrement the byte count seq_tile times).
    slot = b % 2

    def wait(t, carry):
        pltpu.make_async_copy(
            emb_hbm.at[pl.ds(0, 1), :],
            stage_ref.at[slot, pl.ds(t, 1), :],
            sem_ref.at[slot],
        ).wait()
        return carry
    lax.fori_loop(0, seq_tile, wait, 0, unroll=unroll)

    # Lane-dense full-tile compute + unmasked store.
    out_ref[...] = stage_ref[slot] * scale + pe_ref[...]


# ---------------------------------------------------------------------------
# Wrapper
# ---------------------------------------------------------------------------
def transformer_embedding(x_ids, emb_p, pe_p, *, hidden_size, vocab_size,
                          force_hbm_gather=False):
    """Forward of TransformerEmbedding (eval mode).

    emb_p / pe_p are the init-time padded parameters from
    prepare_embedding_params().  Returns (batch, seq_len, hidden_size) f32.
    """
    batch, seq_len = x_ids.shape
    vocab_p, hidden_p = emb_p.shape
    scale = math.sqrt(float(hidden_size))

    vmem_cap = _vmem_capacity_bytes()
    vmem_clamp = vmem_cap * 7 // 8

    seq_tile = _choose_seq_tile(seq_len, hidden_p, vmem_cap)
    seq_padded = _round_up(seq_len, seq_tile)
    n_seq_tiles = seq_padded // seq_tile

    ids_p = x_ids.astype(jnp.int32)
    if seq_padded != seq_len:
        ids_p = jnp.pad(ids_p, ((0, 0), (0, seq_padded - seq_len)))

    if pe_p.shape[0] < seq_padded:
        pe_call = jnp.pad(pe_p, ((0, seq_padded - pe_p.shape[0]), (0, 0)))
    else:
        pe_call = pe_p[:seq_padded]

    out_shape = jax.ShapeDtypeStruct((batch, seq_padded, hidden_p), jnp.float32)
    tile_bytes = seq_tile * hidden_p * 4
    table_bytes = vocab_p * hidden_p * 4

    def _vmem_limit(need):
        return int(max(16 << 20, min(max(need, 32 << 20), vmem_clamp)))

    use_vmem_table = (
        not force_hbm_gather
        and table_bytes <= (16 << 20)
        and 2 * table_bytes + 6 * tile_bytes + (8 << 20) <= vmem_clamp
    )

    if use_vmem_table:
        # --- small table: VMEM-resident, one-hot MXU gather -----------------
        ids3 = ids_p[..., None]                      # (batch, seq_padded, 1)
        grid_spec = pltpu.PrefetchScalarGridSpec(
            num_scalar_prefetch=0,
            grid=(n_seq_tiles, batch),               # seq outer, batch inner
            in_specs=[
                pl.BlockSpec((None, seq_tile, 1), lambda s, b: (b, s, 0)),
                pl.BlockSpec((vocab_p, hidden_p), lambda s, b: (0, 0)),
                pl.BlockSpec((seq_tile, hidden_p), lambda s, b: (s, 0)),
            ],
            out_specs=pl.BlockSpec((None, seq_tile, hidden_p),
                                   lambda s, b: (b, s, 0)),
        )
        cost = pl.CostEstimate(
            flops=2 * batch * seq_padded * vocab_p * hidden_p,
            transcendentals=0,
            bytes_accessed=(table_bytes
                            + batch * seq_padded * hidden_p * 4     # output
                            + n_seq_tiles * tile_bytes              # PE (resident)
                            + batch * seq_padded * 4),              # ids
        )
        out = pl.pallas_call(
            functools.partial(_onehot_gather_kernel, scale=scale),
            grid_spec=grid_spec,
            out_shape=out_shape,
            compiler_params=pltpu.CompilerParams(
                dimension_semantics=("parallel", "parallel"),
                vmem_limit_bytes=_vmem_limit(
                    2 * table_bytes + 6 * tile_bytes + (4 << 20)),
            ),
            cost_estimate=cost,
        )(ids3, emb_p, pe_call)
    else:
        # --- large table: HBM-resident, pipelined per-row DMA gather --------
        kernel = functools.partial(
            _hbm_gather_kernel,
            seq_tile=seq_tile, batch=batch, vocab_size=vocab_size,
            scale=scale, unroll=min(8, seq_tile))
        grid_spec = pltpu.PrefetchScalarGridSpec(
            num_scalar_prefetch=1,                   # token ids -> SMEM
            grid=(n_seq_tiles, batch),               # seq outer, batch inner
            in_specs=[
                pl.BlockSpec(memory_space=pl.ANY),   # embedding table in HBM
                pl.BlockSpec((seq_tile, hidden_p),   # PE resident across batch
                             lambda s, b, ids: (s, 0)),
            ],
            out_specs=pl.BlockSpec((None, seq_tile, hidden_p),
                                   lambda s, b, ids: (b, s, 0)),
            scratch_shapes=[
                pltpu.VMEM((2, seq_tile, hidden_p), jnp.float32),  # 2x staging
                pltpu.SemaphoreType.DMA((2,)),                     # 1 per slot
            ],
        )
        cost = pl.CostEstimate(
            flops=2 * batch * seq_padded * hidden_p,
            transcendentals=0,
            bytes_accessed=(2 * batch * seq_padded * hidden_p * 4  # gather+out
                            + n_seq_tiles * tile_bytes             # PE (resident)
                            + batch * seq_padded * 4),             # ids
        )
        out = pl.pallas_call(
            kernel,
            grid_spec=grid_spec,
            out_shape=out_shape,
            compiler_params=pltpu.CompilerParams(
                dimension_semantics=("parallel", "arbitrary"),
                vmem_limit_bytes=_vmem_limit(6 * tile_bytes + (4 << 20)),
            ),
            cost_estimate=cost,
        )(ids_p, emb_p, pe_call)

    # Metadata-only when seq_len % 8 == 0 and hidden % 128 == 0.
    return out[:, :seq_len, :hidden_size]


if __name__ == "__main__":
    # Small shapes consistent with the module's forward.
    vocab_size, hidden_size, max_len = 64, 32, 16
    batch, seq_len = 2, 8
    dropout = 0.1  # eval mode -> identity

    key = jax.random.PRNGKey(0)
    k_emb, k_ids = jax.random.split(key)

    emb_table = jax.random.normal(k_emb, (vocab_size, hidden_size),
                                  dtype=jnp.float32)
    pe = make_positional_encoding(hidden_size, max_len)
    x_ids = jax.random.randint(k_ids, (batch, seq_len), 0, vocab_size,
                               dtype=jnp.int32)

    # Init-time padding (hoisted out of the per-call path).
    emb_p, pe_p = prepare_embedding_params(emb_table, pe)

    # Pure-JAX reference.
    ref = emb_table[x_ids] * math.sqrt(hidden_size) + pe[:seq_len][None, :, :]

    # Fast path: table resident in VMEM (one-hot MXU gather).
    out_fast = transformer_embedding(x_ids, emb_p, pe_p,
                                     hidden_size=hidden_size,
                                     vocab_size=vocab_size)
    out_fast = jax.block_until_ready(out_fast)
    assert out_fast.shape == (batch, seq_len, hidden_size)
    assert jnp.allclose(out_fast, ref, atol=1e-4, rtol=1e-4), \
        "VMEM fast path mismatch vs reference"

    # Large-table path: HBM-resident table with pipelined per-row DMA gather.
    out_hbm = transformer_embedding(x_ids, emb_p, pe_p,
                                    hidden_size=hidden_size,
                                    vocab_size=vocab_size,
                                    force_hbm_gather=True)
    out_hbm = jax.block_until_ready(out_hbm)
    assert out_hbm.shape == (batch, seq_len, hidden_size)
    assert jnp.allclose(out_hbm, ref, atol=1e-5, rtol=1e-5), \
        "HBM gather path mismatch vs reference"

    print("KERNEL_OK")
</pallas_src>

<mosaic_0001>
module attributes {stable_mosaic.version = 11 : i64} {
  func.func @_onehot_gather_kernel(%arg0: i32, %arg1: i32, %arg2: memref<1x8x1xi32, #tpu.memory_space<vmem>>, %arg3: memref<64x128xf32, #tpu.memory_space<vmem>>, %arg4: memref<8x128xf32, #tpu.memory_space<vmem>>, %arg5: memref<1x8x128xf32, #tpu.memory_space<vmem>>) attributes {dimension_semantics = [#tpu.dimension_semantics<parallel>, #tpu.dimension_semantics<parallel>], iteration_bounds = array<i64: 1, 2>, scalar_prefetch = 0 : i64, scratch_operands = 0 : i64, tpu.core_type = #tpu.core_type<tc>, window_params = [{transform_indices = @transform_0, window_bounds = array<i64: 1, 8, 1>}, {pipeline_mode = #tpu.pipeline_mode<synchronous>, transform_indices = @transform_1, window_bounds = array<i64: 64, 128>}, {transform_indices = @transform_2, window_bounds = array<i64: 8, 128>}, {transform_indices = @transform_3, window_bounds = array<i64: 1, 8, 128>}]} {
    %c0 = arith.constant 0 : index
    %c0_0 = arith.constant 0 : index
    %c0_1 = arith.constant 0 : index
    %0 = vector.load %arg2[%c0, %c0_0, %c0_1] : memref<1x8x1xi32, #tpu.memory_space<vmem>>, vector<1x8x1xi32>
    %1 = vector.shape_cast %0 : vector<1x8x1xi32> to vector<8x1xi32>
    %2 = tpu.iota {dimensions = array<i32: 1>} : vector<8x64xi32>
    %3 = vector.broadcast %1 : vector<8x1xi32> to vector<8x64xi32>
    %4 = arith.cmpi eq, %3, %2 : vector<8x64xi32>
    %5 = arith.extui %4 : vector<8x64xi1> to vector<8x64xi32>
    %6 = arith.sitofp %5 : vector<8x64xi32> to vector<8x64xf32>
    %c0_2 = arith.constant 0 : index
    %c0_3 = arith.constant 0 : index
    %7 = vector.load %arg3[%c0_2, %c0_3] : memref<64x128xf32, #tpu.memory_space<vmem>>, vector<64x128xf32>
    %cst = arith.constant dense<0.000000e+00> : vector<8x128xf32>
    %8 = tpu.matmul %6, %7, %cst {dimension_numbers = #tpu.dot_dimension_numbers<[1], [0], [0], [1], [0, 0, 1, 1], [], []>} : vector<8x64xf32>, vector<64x128xf32>, vector<8x128xf32> -> vector<8x128xf32>
    %cst_4 = arith.constant 5.65685415 : f32
    %9 = vector.broadcast %cst_4 : f32 to vector<8x128xf32>
    %10 = arith.mulf %8, %9 : vector<8x128xf32>
    %c0_5 = arith.constant 0 : index
    %c0_6 = arith.constant 0 : index
    %11 = vector.load %arg4[%c0_5, %c0_6] : memref<8x128xf32, #tpu.memory_space<vmem>>, vector<8x128xf32>
    %12 = arith.addf %10, %11 : vector<8x128xf32>
    %c0_7 = arith.constant 0 : index
    %c0_8 = arith.constant 0 : index
    %c0_9 = arith.constant 0 : index
    %13 = vector.load %arg5[%c0_7, %c0_8, %c0_9] : memref<1x8x128xf32, #tpu.memory_space<vmem>>, vector<1x8x128xf32>
    %14 = vector.shape_cast %13 : vector<1x8x128xf32> to vector<8x128xf32>
    %15 = vector.shape_cast %12 : vector<8x128xf32> to vector<1x8x128xf32>
    tpu.vector_store %arg5[%c0_7, %c0_8, %c0_9], %15 {strides = array<i32>} : memref<1x8x128xf32, #tpu.memory_space<vmem>>, vector<1x8x128xf32>,
    return
  }
  func.func @transform_0(%arg0: i32, %arg1: i32) -> (i32, i32, i32) {
    %c0_i32 = arith.constant 0 : i32
    %c0_i32_0 = arith.constant 0 : i32
    return %arg1, %arg0, %c0_i32 : i32, i32, i32
  }
  func.func @transform_1(%arg0: i32, %arg1: i32) -> (i32, i32) {
    %c0_i32 = arith.constant 0 : i32
    %c0_i32_0 = arith.constant 0 : i32
    %c0_i32_1 = arith.constant 0 : i32
    return %c0_i32, %c0_i32_0 : i32, i32
  }
  func.func @transform_2(%arg0: i32, %arg1: i32) -> (i32, i32) {
    %c0_i32 = arith.constant 0 : i32
    %c0_i32_0 = arith.constant 0 : i32
    return %arg0, %c0_i32 : i32, i32
  }
  func.func @transform_3(%arg0: i32, %arg1: i32) -> (i32, i32, i32) {
    %c0_i32 = arith.constant 0 : i32
    %c0_i32_0 = arith.constant 0 : i32
    return %arg1, %arg0, %c0_i32 : i32, i32, i32
  }
}

</mosaic_0001>

<llo_original>
// kernel: tpu_custom_call.1
$region0: #{tpu_custom_call.1}
  #allocation0 [shape = 'u32[]', space=smem, size = 0x4, offset = 0x4, fixed_abs, tag = 'smem constant byte address 0x4 - core index']
  #allocation1 [shape = 'u32[144,128]{1,0:T(1,128)}', space=vmem, size = 0x12000, scoped, tag = 'internal scratch']
  %s0 = inlined_call_operand.vmem [shape: s32[2,8,1], index: 0, kind: input, shape index: {}]
  %s1 = inlined_call_operand.hbm [shape: f32[64,128], index: 1, kind: input, shape index: {}]
  %s2 = inlined_call_operand.vmem [shape: f32[8,128], index: 2, kind: input, shape index: {}]
  %s3 = inlined_call_operand.hbm [shape: f32[2,8,128], index: 3, kind: output, shape index: {}]
  %s4 = sld [smem:[#allocation0]]
  $region49: #{tpu_custom_call.1} parent=0
    _
  %s6 = ssub.s32 1, %s4
  %s7 = scalar_select 0, %s6, %s4
  $region1: #{tpu_custom_call.1} parent=0
    #allocation2 [shape = 'u8[32768]{0}', space=vmem, size = 0x8000, scoped, tag = 'input window, operand 1, single buffered']
    #allocation3 [shape = 's32[2]{0}', space=sflag, size = 0x8, scoped, tag = 'scoped memory for tpu_custom_call.1']
    #allocation4 [shape = 's32[2]{0}', space=sflag, size = 0x8, scoped, tag = 'scoped memory for tpu_custom_call.1']
    #allocation5 [shape = 'u8[8192]{0}', space=vmem, size = 0x2000, scoped, tag = 'output window, operand 0']
    %8 = vsyncpa [#allocation3], 0
    %9 = vsyncpa [#allocation4], 0
    %s10 = scalar_lea.sflag [#allocation4], 1
    %11 = vsyncpa %s10, 0
    loop: start=0, step=1, limit=4
    $region2: #{tpu_custom_call.1} parent=1 // loop_pre_header
      _
    $region3: #{tpu_custom_call.1} parent=1 // loop_header
      %s13 = sphi 0, %s17
      %p14 = scmp.ge.s32.totalorder %s13, 4
      %s20 = sphi 0, %s32
      %s21 = sphi 0, %s28
      %s22 = sphi 0, %s20
      %s23 = sphi 0, %s21
      %s24 = sphi 0, %s22
      %s25 = sphi 0, %s23
      %s37 = sphi 0, %s39
      %s40 = sphi 0, %s37
      %s41 = sphi 0, %s40
      %s57 = sphi 0, %s41
      %s61 = sphi 0, %s61
      %s63 = sphi 0, %s61
      %s64 = sphi 0, %s63
      %s78 = sphi 0, %s64
      %s84 = sphi 0, %s86
      %s87 = sphi 0, %s84
      %s88 = sphi 0, %s87
      %s104 = sphi 0, %s88
      %s112 = sphi 0, %s114
      %s115 = sphi 0, %s112
      %s116 = sphi 0, %s115
      %s132 = sphi 0, %s116
    $region4: #{tpu_custom_call.1} parent=1 // loop_header_branch
      %16 = sbr.rel (%p14) target = $region8
    $region5: #{tpu_custom_call.1} parent=1 // loop_body
      %s18 = ssub.s32 %s13, 1
      %s19 = ssub.s32 %s13, 2
      %s26 = sadd.s32 1, %s21
      %p27 = scmp.ge.s32.totalorder %s26, 2
      %s28 = scalar_select %p27, 0, %s26
      %s29 = sadd.s32 1, %s20
      %s30 = scalar_select %p27, %s29, %s20
      %p31 = scmp.ge.s32.totalorder %s30, 1
      %s32 = scalar_select %p31, 0, %s30
      %s33 = ssub.s32 %s21, %s28
      %s34 = ssub.s32 %s20, %s32
      %s35 = sor.u32 %s33, %s34
      %p36 = scmp.eq.s32.totalorder %s35, 0
      %s38 = sadd.s32 %s37, 1
      %s39 = scalar_select %p36, %s37, %s38
      %p42 = pneg %p36
      %p43 = scmp.eq.s32.totalorder %s13, 1
      %p44 = por %p42, %p43
      %p45 = scmp.ne.s32.totalorder %s37, %s40
      %p46 = scmp.eq.s32.totalorder %s13, 0
      %p47 = por %p45, %p46
      %p48 = scmp.ne.s32.totalorder %s37, %s40
      %p49 = scmp.eq.s32.totalorder %s18, 1
      %p50 = por %p48, %p49
      %p51 = scmp.ne.s32.totalorder %s40, %s41
      %p52 = scmp.eq.s32.totalorder %s18, 0
      %p53 = por %p51, %p52
      %p54 = scmp.ne.s32.totalorder %s40, %s41
      %p55 = scmp.eq.s32.totalorder %s19, 1
      %p56 = por %p54, %p55
      %p58 = scmp.ne.s32.totalorder %s41, %s57
      %p59 = scmp.eq.s32.totalorder %s19, 0
      %p60 = por %p58, %p59
      %s62 = sadd.s32 %s61, 1
      %p65 = scmp.eq.s32.totalorder %s13, 1
      %p66 = scmp.ne.s32.totalorder %s61, %s63
      %p67 = scmp.eq.s32.totalorder %s13, 0
      %p68 = por %p66, %p67
      %p69 = scmp.ne.s32.totalorder %s61, %s63
      %p70 = scmp.eq.s32.totalorder %s18, 1
      %p71 = por %p69, %p70
      %p72 = scmp.ne.s32.totalorder %s63, %s64
      %p73 = scmp.eq.s32.totalorder %s18, 0
      %p74 = por %p72, %p73
      %p75 = scmp.ne.s32.totalorder %s63, %s64
      %p76 = scmp.eq.s32.totalorder %s19, 1
      %p77 = por %p75, %p76
      %p79 = scmp.ne.s32.totalorder %s64, %s78
      %p80 = scmp.eq.s32.totalorder %s19, 0
      %p81 = por %p79, %p80
      %s82 = ssub.s32 %s20, %s32
      %p83 = scmp.eq.s32.totalorder %s82, 0
      %s85 = sadd.s32 %s84, 1
      %s86 = scalar_select %p83, %s84, %s85
      %p89 = pneg %p83
      %p90 = scmp.eq.s32.totalorder %s13, 1
      %p91 = por %p89, %p90
      %p92 = scmp.ne.s32.totalorder %s84, %s87
      %p93 = scmp.eq.s32.totalorder %s13, 0
      %p94 = por %p92, %p93
      %p95 = scmp.ne.s32.totalorder %s84, %s87
      %p96 = scmp.eq.s32.totalorder %s18, 1
      %p97 = por %p95, %p96
      %p98 = scmp.ne.s32.totalorder %s87, %s88
      %p99 = scmp.eq.s32.totalorder %s18, 0
      %p100 = por %p98, %p99
      %p101 = scmp.ne.s32.totalorder %s87, %s88
      %p102 = scmp.eq.s32.totalorder %s19, 1
      %p103 = por %p101, %p102
      %p105 = scmp.ne.s32.totalorder %s88, %s104
      %p106 = scmp.eq.s32.totalorder %s19, 0
      %p107 = por %p105, %p106
      %s108 = ssub.s32 %s21, %s28
      %s109 = ssub.s32 %s20, %s32
      %s110 = sor.u32 %s108, %s109
      %p111 = scmp.eq.s32.totalorder %s110, 0
      %s113 = sadd.s32 %s112, 1
      %s114 = scalar_select %p111, %s112, %s113
      %p117 = pneg %p111
      %p118 = scmp.eq.s32.totalorder %s13, 1
      %p119 = por %p117, %p118
      %p120 = scmp.ne.s32.totalorder %s112, %s115
      %p121 = scmp.eq.s32.totalorder %s13, 0
      %p122 = por %p120, %p121
      %p123 = scmp.ne.s32.totalorder %s112, %s115
      %p124 = scmp.eq.s32.totalorder %s18, 1
      %p125 = por %p123, %p124
      %p126 = scmp.ne.s32.totalorder %s115, %s116
      %p127 = scmp.eq.s32.totalorder %s18, 0
      %p128 = por %p126, %p127
      %p129 = scmp.ne.s32.totalorder %s115, %s116
      %p130 = scmp.eq.s32.totalorder %s19, 1
      %p131 = por %p129, %p130
      %p133 = scmp.ne.s32.totalorder %s116, %s132
      %p134 = scmp.eq.s32.totalorder %s19, 0
      %p135 = por %p133, %p134
      %p136 = scmp.le.s32.totalorder 1, %s13
      %p137 = scmp.lt.s32.totalorder %s13, 3
      %p138 = pnand %p136, %p137
      %p139 = pneg %p138
      // Predicated region
      $region9: #{tpu_custom_call.1} parent=5 // pred_check
        _
      $region10: #{tpu_custom_call.1} parent=5 // pred_check_branch
        %141 = sbr.rel (%p138) target = $region12
      $region11: #{tpu_custom_call.1} parent=5 // pred_region
        %s142 = ssub.s32 %s13, 1
        // Predicated region
        $region13: #{tpu_custom_call.1} parent=11 // pred_check
          %p143 = pneg %p74
        $region14: #{tpu_custom_call.1} parent=11 // pred_check_branch
          %145 = sbr.rel (%p143) target = $region16
        $region15: #{tpu_custom_call.1} parent=11 // pred_region
          %s147 = ssub.s32 1024, 1024
          %148 = vsyncadd [#allocation3], %s147
          %s149 = sshll.u32 [#allocation2], 4
          %s150 = int_to_ptr.vmem [resolvable:$true] %s149
          %155 = dma.hbm_to_vmem [thread:$0]  %s1, 1024, %s150, [#allocation3], 128, 128, 8
        $region16: #{tpu_custom_call.1} parent=11 // pred_fallthru
          _
        // Predicated region
        $region17: #{tpu_custom_call.1} parent=11 // pred_check
          %p156 = pneg %p100
        $region18: #{tpu_custom_call.1} parent=11 // pred_check_branch
          %158 = sbr.rel (%p156) target = $region20
        $region19: #{tpu_custom_call.1} parent=11 // pred_region
          %p159 = scmp.lt.s32.totalorder %s22, 0
          %s160 = scalar_select %p159, %s22, 0
          %s161 = smul.addr %s160, 8
          %s162 = scalar_lea.vmem %s2, %s161
        $region20: #{tpu_custom_call.1} parent=11 // pred_fallthru
          _
      $region12: #{tpu_custom_call.1} parent=5 // pred_fallthru
        _
      %p163 = scmp.lt.s32.totalorder %s13, 2
      // Predicated region
      $region21: #{tpu_custom_call.1} parent=5 // pred_check
        %p164 = pneg %p163
      $region22: #{tpu_custom_call.1} parent=5 // pred_check_branch
        %166 = sbr.rel (%p164) target = $region24
      $region23: #{tpu_custom_call.1} parent=5 // pred_region
        // Predicated region
        $region25: #{tpu_custom_call.1} parent=23 // pred_check
          %p167 = pneg %p47
        $region26: #{tpu_custom_call.1} parent=23 // pred_check_branch
          %169 = sbr.rel (%p167) target = $region28
        $region27: #{tpu_custom_call.1} parent=23 // pred_region
          %p170 = scmp.lt.s32.totalorder %s21, 1
          %s171 = scalar_select %p170, %s21, 1
          %p172 = scmp.lt.s32.totalorder %s20, 0
          %s173 = scalar_select %p172, %s20, 0
          %s174 = sadd.s32 %s173, %s171
          %s175 = smul.addr %s174, 8
          %s176 = scalar_lea.vmem %s0, %s175
        $region28: #{tpu_custom_call.1} parent=23 // pred_fallthru
          _
      $region24: #{tpu_custom_call.1} parent=5 // pred_fallthru
        _
      %p177 = scmp.le.s32.totalorder 1, %s13
      %p178 = scmp.lt.s32.totalorder %s13, 3
      %p179 = pnand %p177, %p178
      %p180 = pneg %p179
      // Predicated region
      $region29: #{tpu_custom_call.1} parent=5 // pred_check
        _
      $region30: #{tpu_custom_call.1} parent=5 // pred_check_branch
        %182 = sbr.rel (%p179) target = $region32
      $region31: #{tpu_custom_call.1} parent=5 // pred_region
        %s183 = ssub.s32 %s13, 1
        // Predicated region
        $region33: #{tpu_custom_call.1} parent=31 // pred_check
          %p184 = pneg %p74
        $region34: #{tpu_custom_call.1} parent=31 // pred_check_branch
          %186 = sbr.rel (%p184) target = $region36
        $region35: #{tpu_custom_call.1} parent=31 // pred_region
          %187 = dma.done [#allocation3], 1024
        $region36: #{tpu_custom_call.1} parent=31 // pred_fallthru
          _
        %p188 = scmp.lt.s32.totalorder %s23, 1
        %s189 = scalar_select %p188, %s23, 1
        %p190 = scmp.lt.s32.totalorder %s22, 0
        %s191 = scalar_select %p190, %s22, 0
        %s192 = sadd.s32 %s191, %s189
        %s193 = smul.addr %s192, 8
        %s194 = scalar_lea.vmem %s0, %s193
        %p195 = pneg %p53
        %p196 = pneg %p50
        %p197 = pneg %p74
        %p198 = pneg %p71
        %p199 = scmp.lt.s32.totalorder %s22, 0
        %s200 = scalar_select %p199, %s22, 0
        %s201 = smul.addr %s200, 8
        %s202 = scalar_lea.vmem %s2, %s201
        %p203 = pneg %p100
        %p204 = pneg %p97
        %p205 = pneg %p128
        %p206 = pneg %p125
        %s207 = sand.u32 %s115, 1
        %s208 = scalar_lea.sflag [#allocation4], %s207
        %s209 = sand.u32 %s115, 1
        %s210 = smul.addr %s209, 8
        %s211 = scalar_lea.vmem [#allocation5], %s210
        %p212 = scmp.lt.s32.totalorder %s23, 1
        %s213 = scalar_select %p212, %s23, 1
        %p214 = scmp.lt.s32.totalorder %s22, 0
        %s215 = scalar_select %p214, %s22, 0
        %s216 = sadd.s32 %s215, %s213
        %s217 = smul.addr %s216, 8
        %s218 = scalar_lea.vmem %s0, %s217
        %p219 = scmp.lt.s32.totalorder %s22, 0
        %s220 = scalar_select %p219, %s22, 0
        %s221 = smul.addr %s220, 8
        %s222 = scalar_lea.vmem %s2, %s221
        %v223 = vld [vmem:[%s218] sm:$0xff]
        %v224 = vlaneseq
        %v225 = vand.u32 %v224, 127
        %226 = vset.pattern.permute.xlu0 0
        %227 = vperm.xlu0 %226, %v223
        %v228 = vpop.permute.xlu0 %227
        %vm229 = vcmp.eq.s32.totalorder %v228, %v225
        %v230 = vsel %vm229, 1, 0
        %v231 = vcvt.s32.f32 %v230
        %v232 = vld [vmem:[#allocation2] sm:$0xff]
        %v233 = vld [vmem:[#allocation2 + $0x8] sm:$0xff]
        %v234 = vld [vmem:[#allocation2 + $0x10] sm:$0xff]
        %v235 = vld [vmem:[#allocation2 + $0x18] sm:$0xff]
        %v236 = vld [vmem:[#allocation2 + $0x20] sm:$0xff]
        %v237 = vld [vmem:[#allocation2 + $0x28] sm:$0xff]
        %v238 = vld [vmem:[#allocation2 + $0x30] sm:$0xff]
        %v239 = vld [vmem:[#allocation2 + $0x38] sm:$0xff]
        %vm240 = vcmask 523264
        %v242 = vsel %vm240, %v231, 0
        %244 = vmatprep.subr.mxu0 0.0
        %245 = vmatpush1.msra.mxu0 %v232
        %246 = vmatprep.subr.mxu0 0.0
        %247 = vmatpush1.msra.mxu0 %v233
        %248 = vmatprep.subr.mxu0 0.0
        %249 = vmatpush1.msra.mxu0 %v234
        %250 = vmatprep.subr.mxu0 0.0
        %251 = vmatpush1.msra.mxu0 %v235
        %252 = vmatprep.subr.mxu0 0.0
        %253 = vmatpush1.msra.mxu0 %v236
        %254 = vmatprep.subr.mxu0 0.0
        %255 = vmatpush1.msra.mxu0 %v237
        %256 = vmatprep.subr.mxu0 0.0
        %257 = vmatpush1.msra.mxu0 %v238
        %258 = vmatprep.subr.mxu0 0.0
        %259 = vmatpush1.msra.mxu0 %v239
        %260 = vmatprep.subr.mxu0 0.0
        %261 = vmatpush1.msra.mxu0 0.0
        %262 = vmatprep.subr.mxu0 0.0
        %263 = vmatpush1.msra.mxu0 0.0
        %264 = vmatprep.subr.mxu0 0.0
        %265 = vmatpush1.msra.mxu0 0.0
        %266 = vmatprep.subr.mxu0 0.0
        %267 = vmatpush1.msra.mxu0 0.0
        %268 = vmatprep.subr.mxu0 0.0
        %269 = vmatpush1.msra.mxu0 0.0
        %270 = vmatprep.subr.mxu0 0.0
        %271 = vmatpush1.msra.mxu0 0.0
        %272 = vmatprep.subr.mxu0 0.0
        %273 = vmatpush1.msra.mxu0 0.0
        %274 = vmatprep.subr.mxu0 0.0
        %275 = vmatpush1.msra.mxu0 0.0
        %276 = vmatprep.subr.mxu0 0.0
        %277 = vmatpush1.msra.mxu0 0.0
        %278 = vmatprep.subr.mxu0 0.0
        %279 = vmatpush1.msra.mxu0 0.0
        %280 = vmatprep.subr.mxu0 0.0
        %281 = vmatpush1.msra.mxu0 0.0
        %282 = vmatprep.subr.mxu0 0.0
        %283 = vmatpush1.msra.mxu0 0.0
        %284 = vmatprep.subr.mxu0 0.0
        %285 = vmatpush1.msra.mxu0 0.0
        %286 = vmatprep.subr.mxu0 0.0
        %287 = vmatpush1.msra.mxu0 0.0
        %288 = vmatprep.subr.mxu0 0.0
        %289 = vmatpush1.msra.mxu0 0.0
        %290 = vmatprep.subr.mxu0 0.0
        %291 = vmatpush1.msra.mxu0 0.0
        %292 = vmatprep.subr.mxu0 0.0
        %293 = vmatpush1.msra.mxu0 0.0
        %294 = vmatprep.subr.mxu0 0.0
        %295 = vmatpush1.msra.mxu0 0.0
        %296 = vmatprep.subr.mxu0 0.0
        %297 = vmatpush1.msra.mxu0 0.0
        %298 = vmatprep.subr.mxu0 0.0
        %299 = vmatpush1.msra.mxu0 0.0
        %300 = vmatprep.subr.mxu0 0.0
        %301 = vmatpush1.msra.mxu0 0.0
        %302 = vmatprep.subr.mxu0 0.0
        %303 = vmatpush1.msra.mxu0 0.0
        %304 = vmatprep.subr.mxu0 0.0
        %305 = vmatpush1.msra.mxu0 0.0
        %306 = vmatprep.subr.mxu0 0.0
        %307 = vmatpush1.msra.mxu0 0.0
        %308 = vmatprep.mubr.f32.mxu0 0.0
        %309 = vmatmul.mubr.f32.gmra.mrb[0].mxu0 %v242
        %v310 = vpop.f32.mrb[0].mxu0
        %v311 = vadd.f32 0.0, %v310
        %v312 = vpop.f32.mrb[0].mxu0
        %313 = vdwg.mxu0
        %v314 = vmul.f32 %v311, 5.656854
        %v315 = vld [vmem:[%s222] sm:$0xff]
        %v316 = vadd.f32 %v314, %v315
        %317 = vst [vmem:[%s211] sm:$0xff] %v316
        %s318 = sand.u32 %s115, 1
        %s319 = scalar_lea.sflag [#allocation4], %s318
        %s320 = sand.u32 %s115, 1
        %s321 = smul.addr %s320, 8
        %s322 = scalar_lea.vmem [#allocation5], %s321
        // Predicated region
        $region37: #{tpu_custom_call.1} parent=31 // pred_check
          %p323 = pneg %p125
        $region38: #{tpu_custom_call.1} parent=31 // pred_check_branch
          %325 = sbr.rel (%p323) target = $region40
        $region39: #{tpu_custom_call.1} parent=31 // pred_region
          %s327 = ssub.s32 128, 128
          %328 = vsyncadd %s319, %s327
          %s329 = sadd.s32 %s22, %s23
          %s330 = smul.addr %s329, 128
          %s331 = scalar_lea.hbm %s3, %s330
          %s333 = sshll.u32 %s322, 4
          %s334 = int_to_ptr.vmem [resolvable:$true] %s333
          %336 = dma.vmem_to_hbm [thread:$0]  %s334, 128, %s331, %s319
        $region40: #{tpu_custom_call.1} parent=31 // pred_fallthru
          _
      $region32: #{tpu_custom_call.1} parent=5 // pred_fallthru
        _
      %p337 = scmp.le.s32.totalorder 2, %s13
      // Predicated region
      $region41: #{tpu_custom_call.1} parent=5 // pred_check
        %p338 = pneg %p337
      $region42: #{tpu_custom_call.1} parent=5 // pred_check_branch
        %340 = sbr.rel (%p338) target = $region44
      $region43: #{tpu_custom_call.1} parent=5 // pred_region
        %s341 = ssub.s32 %s13, 2
        // Predicated region
        $region45: #{tpu_custom_call.1} parent=43 // pred_check
          %p342 = pneg %p131
        $region46: #{tpu_custom_call.1} parent=43 // pred_check_branch
          %344 = sbr.rel (%p342) target = $region48
        $region47: #{tpu_custom_call.1} parent=43 // pred_region
          %s345 = sand.u32 %s116, 1
          %s346 = scalar_lea.sflag [#allocation4], %s345
          %s347 = sand.u32 %s116, 1
          %s348 = smul.addr %s347, 8
          %s349 = scalar_lea.vmem [#allocation5], %s348
          %350 = dma.done %s346, 128
        $region48: #{tpu_custom_call.1} parent=43 // pred_fallthru
          _
      $region44: #{tpu_custom_call.1} parent=5 // pred_fallthru
        _
    $region6: #{tpu_custom_call.1} parent=1 // loop_footer
      %s17 = sadd.s32 1, %s13
    $region7: #{tpu_custom_call.1} parent=1 // loop_footer_branch
      %12 = sbr.rel target = $region3
    $region8: #{tpu_custom_call.1} parent=1 // loop_exit
      _
    %351 = vsyncpa [#allocation3], 1
    %s352 = scalar_lea.sflag [#allocation3], 1
    %353 = vsyncpa %s352, 1
    %354 = vsyncpa [#allocation4], 1
    %s355 = scalar_lea.sflag [#allocation4], 1
    %356 = vsyncpa %s355, 1

</llo_original>
